<compile_context>
chip_gen: v7x
topology: tpu7x:2x2x1
jax: 0.10.0
libtpu: 0.0.40
codegen_flags: <defaults>
</compile_context>

<pallas_src>
import functools

import jax
import jax.numpy as jnp
from jax.experimental import pallas as pl
from jax.experimental.pallas import tpu as pltpu


def _patch_merge_kernel(x_ref, w_ref, cb_ref, o_ref, *, eps, inv_4c):
    # x_ref : (th2, 2, W2, 2C)    w_ref : (2, 2C, 2Co)  gamma-folded, row-split
    # cb_ref: (2, 2Co)            row 0 = colsum(Wg), row 1 = beta @ W^T
    # o_ref : (th2, W2, 2Co)
    x = x_ref[...]
    xe = x[:, 0]                      # (th2, W2, 2C)  = [x0 | x2]
    xo = x[:, 1]                      # (th2, W2, 2C)  = [x1 | x3]

    # One-pass LayerNorm statistics over the merged 4C features (f32).
    xef = xe.astype(jnp.float32)
    xof = xo.astype(jnp.float32)
    s = jnp.sum(xef, axis=-1, keepdims=True) + jnp.sum(xof, axis=-1, keepdims=True)
    ss = (jnp.sum(xef * xef, axis=-1, keepdims=True)
          + jnp.sum(xof * xof, axis=-1, keepdims=True))
    mean = s * inv_4c
    var = jnp.maximum(ss * inv_4c - mean * mean, 0.0)
    rstd = jax.lax.rsqrt(var + eps)

    # Raw reduction matmul on un-normalized inputs (LN applied afterwards).
    th2, _, w2, c2 = x_ref.shape
    rows = th2 * w2
    w = w_ref[...]                                   # (2, 2C, 2Co)
    lhs_e = xe.reshape(rows, c2).astype(w.dtype)
    lhs_o = xo.reshape(rows, c2).astype(w.dtype)
    raw = jnp.dot(lhs_e, w[0], preferred_element_type=jnp.float32)
    raw = raw + jnp.dot(lhs_o, w[1], preferred_element_type=jnp.float32)
    raw = raw.reshape(th2, w2, -1)                   # (th2, W2, 2Co) f32

    cb = cb_ref[...]                                 # (2, 2Co) f32
    csum = cb[0:1]                                   # (1, 2Co) -> bcast
    bias = cb[1:2]
    y = (raw - mean * csum) * rstd + bias
    o_ref[...] = y.astype(o_ref.dtype)


def _vmem_budget(requested):
    """Generation-aware scoped-VMEM request (bytes)."""
    try:
        cap = int(pltpu.get_tpu_info().vmem_capacity_bytes)
    except Exception:  # noqa: BLE001 - fall back to the smallest (v7x) VMEM
        cap = 64 * 1024 * 1024
    # Leave ~16 MiB for compiler-internal scratch / semaphores: v7x (64 MiB
    # physical) caps at ~48 MiB, v5e/v6e (128 MiB) get the full request.
    return max(16 * 1024 * 1024, min(requested, cap - 16 * 1024 * 1024))


def _choose_th2(bh2, w2, c, x_isz, out_isz, mm_isz, budget, rows_per_tile,
                min_steps=16):
    """Largest H2-row tile fitting VMEM (f32 temps included), capped so the
    1-D parallel grid keeps >= min_steps steps when the problem allows it."""
    in_elems = 4 * w2 * c             # both dh slabs per unit of th2
    out_elems = 2 * w2 * c            # 2Co outputs per unit of th2
    per_row = (2 * in_elems * x_isz            # double-buffered input tile
               + 2 * out_elems * out_isz       # double-buffered output tile
               + in_elems * (4 + mm_isz)       # f32 stats temps + mm-dtype lhs
               + 2 * out_elems * 4)            # f32 raw / y temporaries
    fixed = (2 * (2 * c) * (2 * c)) * mm_isz + (2 * (2 * c)) * 4  # W (1-buf) + cb
    avail = max(budget - fixed, per_row)
    th2_vmem = max(1, avail // per_row)
    th2 = max(1, min(rows_per_tile // max(w2, 1), th2_vmem, bh2))
    # Keep enough grid steps for v7x's 2 TensorCores + DMA pipeline depth,
    # as long as tiles keep >= ~128 output rows.
    th2_steps = max(1, bh2 // min_steps)
    if th2_steps * w2 >= 128:
        th2 = min(th2, th2_steps)
    return int(max(1, th2))


def patch_merging(x, H, W, gamma, beta, w_red, *, eps=1e-5, rows_per_tile=1024,
                  mm_dtype=None, vmem_limit_bytes=96 * 1024 * 1024):
    """Swin PatchMerging: 2x2 gather -> LayerNorm(4C) -> Linear(4C->2C, no bias).

    x     : (B, H*W, C)
    gamma : (4C,) LayerNorm weight      beta : (4C,) LayerNorm bias
    w_red : (2C, 4C)  PyTorch nn.Linear weight (out_features, in_features)
    returns (B, ceil(H/2)*ceil(W/2), 2C) in x.dtype
    """
    B, L, C = x.shape
    assert L == H * W, "input feature has wrong size"
    Co2 = 2 * C

    # ---- free row-major view: (B, H, W, C) -> (B*H2, 2, W2, 2C) ----
    xv = x.reshape(B, H, W, C)
    if (H % 2 == 1) or (W % 2 == 1):
        # TODO(synk): odd-H/W zero padding stays in plain JAX (one extra copy,
        # only taken on odd spatial dims, same semantics as F.pad).
        xv = jnp.pad(xv, ((0, 0), (0, H % 2), (0, W % 2), (0, 0)))
    Hp, Wp = xv.shape[1], xv.shape[2]
    H2, W2 = Hp // 2, Wp // 2
    BH2 = B * H2
    xv = xv.reshape(BH2, 2, W2, 2 * C)        # free reshape, no gather in HBM

    # ---- fold LayerNorm affine into the reduction matmul (trace time) ----
    if mm_dtype is None:
        # TODO(synk): on v5e, forcing bfloat16 here even for f32 activations
        # keeps the kernel memory-bound at large C if the accuracy budget allows.
        mm_dtype = jnp.bfloat16 if x.dtype == jnp.bfloat16 else jnp.float32
    w_t = w_red.T.astype(jnp.float32)                       # (4C, 2Co)
    w_fold = gamma.astype(jnp.float32)[:, None] * w_t       # gamma folded
    # Row-split Wg to match the dh=0 ([x0|x2]) / dh=1 ([x1|x3]) input slabs.
    w_even = jnp.concatenate([w_fold[0:C], w_fold[2 * C:3 * C]], axis=0)
    w_odd = jnp.concatenate([w_fold[C:2 * C], w_fold[3 * C:4 * C]], axis=0)
    w_stack = jnp.stack([w_even, w_odd], axis=0).astype(mm_dtype)  # (2, 2C, 2Co)
    csum = jnp.sum(w_fold, axis=0)                          # (2Co,)
    bias = beta.astype(jnp.float32) @ w_t                   # (2Co,)
    cb = jnp.stack([csum, bias], axis=0)                    # (2, 2Co) f32

    # ---- tiling: VMEM-budgeted th2, cdiv grid (ragged tail handled) ----
    vmem_limit = _vmem_budget(vmem_limit_bytes)
    th2 = _choose_th2(
        BH2, W2, C,
        jnp.dtype(x.dtype).itemsize,
        jnp.dtype(x.dtype).itemsize,
        jnp.dtype(mm_dtype).itemsize,
        (3 * vmem_limit) // 4,                # headroom vs. the scoped limit
        rows_per_tile,
    )
    grid = (pl.cdiv(BH2, th2),)

    out = pl.pallas_call(
        functools.partial(_patch_merge_kernel, eps=eps, inv_4c=1.0 / (4.0 * C)),
        out_shape=jax.ShapeDtypeStruct((BH2, W2, Co2), x.dtype),
        grid_spec=pltpu.PrefetchScalarGridSpec(
            num_scalar_prefetch=0,
            grid=grid,
            in_specs=[
                pl.BlockSpec((th2, 2, W2, 2 * C), lambda i: (i, 0, 0, 0)),
                # Grid-invariant operands: single-buffered, never re-DMA'd.
                pl.BlockSpec((2, 2 * C, Co2), lambda i: (0, 0, 0),
                             pipeline_mode=pl.Buffered(1)),
                pl.BlockSpec((2, Co2), lambda i: (0, 0),
                             pipeline_mode=pl.Buffered(1)),
            ],
            # TODO(synk): present a lane-dense output slab when 2C % 128 != 0
            # (small-C stages) to avoid masked vst partial stores.
            out_specs=pl.BlockSpec((th2, W2, Co2), lambda i: (i, 0, 0)),
        ),
        compiler_params=pltpu.CompilerParams(
            dimension_semantics=("parallel",),
            vmem_limit_bytes=vmem_limit,
        ),
    )(xv, w_stack, cb)

    return out.reshape(B, H2 * W2, Co2)


def _reference(x, H, W, gamma, beta, w_red, eps=1e-5):
    B, L, C = x.shape
    xv = x.reshape(B, H, W, C)
    if (H % 2 == 1) or (W % 2 == 1):
        xv = jnp.pad(xv, ((0, 0), (0, H % 2), (0, W % 2), (0, 0)))
    x0 = xv[:, 0::2, 0::2, :]
    x1 = xv[:, 1::2, 0::2, :]
    x2 = xv[:, 0::2, 1::2, :]
    x3 = xv[:, 1::2, 1::2, :]
    xc = jnp.concatenate([x0, x1, x2, x3], axis=-1).reshape(B, -1, 4 * C)
    mean = jnp.mean(xc, axis=-1, keepdims=True)
    var = jnp.mean((xc - mean) ** 2, axis=-1, keepdims=True)
    xn = (xc - mean) / jnp.sqrt(var + eps)
    xn = xn * gamma + beta
    return jnp.einsum("blk,ok->blo", xn, w_red,
                      precision=jax.lax.Precision.HIGHEST)


if __name__ == "__main__":
    key = jax.random.PRNGKey(0)

    def run_case(k, B, H, W, C, **kw):
        k_x, k_w, k_g, k_b = jax.random.split(k, 4)
        x = jax.random.normal(k_x, (B, H * W, C), dtype=jnp.float32)
        # nn.Linear(4*dim, 2*dim, bias=False).weight -> (2*dim, 4*dim)
        w_red = jax.random.normal(k_w, (2 * C, 4 * C), dtype=jnp.float32) * 0.02
        gamma = 1.0 + 0.1 * jax.random.normal(k_g, (4 * C,), dtype=jnp.float32)
        beta = 0.1 * jax.random.normal(k_b, (4 * C,), dtype=jnp.float32)

        out = jax.block_until_ready(
            patch_merging(x, H, W, gamma, beta, w_red, **kw))
        ref = _reference(x, H, W, gamma, beta, w_red)
        H2, W2 = (H + 1) // 2, (W + 1) // 2
        assert out.shape == (B, H2 * W2, 2 * C), out.shape
        err = float(jnp.max(jnp.abs(out - ref)))
        # Loose enough to also cover a bf16 MXU feed path; indexing / folding
        # bugs would produce O(0.1+) errors and still be caught.
        assert err < 2e-3, err
        return err

    k1, k2 = jax.random.split(key)
    run_case(k1, B=2, H=8, W=8, C=32)                    # even dims, single tile
    run_case(k2, B=2, H=7, W=6, C=16, rows_per_tile=9)   # odd-H pad + ragged grid tail
    print("KERNEL_OK")
</pallas_src>

<mosaic_0001>
module attributes {stable_mosaic.version = 11 : i64} {
  func.func @_patch_merge_kernel(%arg0: i32, %arg1: memref<8x2x4x64xf32, #tpu.memory_space<vmem>>, %arg2: memref<2x64x64xf32, #tpu.memory_space<vmem>>, %arg3: memref<2x64xf32, #tpu.memory_space<vmem>>, %arg4: memref<8x4x64xf32, #tpu.memory_space<vmem>>) attributes {dimension_semantics = [#tpu.dimension_semantics<parallel>], iteration_bounds = array<i64: 1>, scalar_prefetch = 0 : i64, scratch_operands = 0 : i64, tpu.core_type = #tpu.core_type<tc>, window_params = [{transform_indices = @transform_0, window_bounds = array<i64: 8, 2, 4, 64>}, {pipeline_mode = #tpu.pipeline_mode<synchronous>, transform_indices = @transform_1, window_bounds = array<i64: 2, 64, 64>}, {pipeline_mode = #tpu.pipeline_mode<synchronous>, transform_indices = @transform_2, window_bounds = array<i64: 2, 64>}, {transform_indices = @transform_3, window_bounds = array<i64: 8, 4, 64>}]} {
    %c0 = arith.constant 0 : index
    %c0_0 = arith.constant 0 : index
    %c0_1 = arith.constant 0 : index
    %c0_2 = arith.constant 0 : index
    %0 = vector.load %arg1[%c0, %c0_0, %c0_1, %c0_2] : memref<8x2x4x64xf32, #tpu.memory_space<vmem>>, vector<8x2x4x64xf32>
    %1 = vector.extract_strided_slice %0 {offsets = [0, 0, 0, 0], sizes = [8, 1, 4, 64], strides = [1, 1, 1, 1]} : vector<8x2x4x64xf32> to vector<8x1x4x64xf32>
    %2 = vector.shape_cast %1 : vector<8x1x4x64xf32> to vector<8x4x64xf32>
    %3 = vector.extract_strided_slice %0 {offsets = [0, 1, 0, 0], sizes = [8, 1, 4, 64], strides = [1, 1, 1, 1]} : vector<8x2x4x64xf32> to vector<8x1x4x64xf32>
    %4 = vector.shape_cast %3 : vector<8x1x4x64xf32> to vector<8x4x64xf32>
    %cst = arith.constant dense<0.000000e+00> : vector<8x4xf32>
    %5 = vector.multi_reduction <add>, %2, %cst [2] : vector<8x4x64xf32> to vector<8x4xf32>
    %6 = vector.shape_cast %5 : vector<8x4xf32> to vector<8x4x1xf32>
    %cst_3 = arith.constant dense<0.000000e+00> : vector<8x4xf32>
    %7 = vector.multi_reduction <add>, %4, %cst_3 [2] : vector<8x4x64xf32> to vector<8x4xf32>
    %8 = vector.shape_cast %7 : vector<8x4xf32> to vector<8x4x1xf32>
    %9 = arith.addf %6, %8 : vector<8x4x1xf32>
    %10 = arith.mulf %2, %2 : vector<8x4x64xf32>
    %cst_4 = arith.constant dense<0.000000e+00> : vector<8x4xf32>
    %11 = vector.multi_reduction <add>, %10, %cst_4 [2] : vector<8x4x64xf32> to vector<8x4xf32>
    %12 = vector.shape_cast %11 : vector<8x4xf32> to vector<8x4x1xf32>
    %13 = arith.mulf %4, %4 : vector<8x4x64xf32>
    %cst_5 = arith.constant dense<0.000000e+00> : vector<8x4xf32>
    %14 = vector.multi_reduction <add>, %13, %cst_5 [2] : vector<8x4x64xf32> to vector<8x4xf32>
    %15 = vector.shape_cast %14 : vector<8x4xf32> to vector<8x4x1xf32>
    %16 = arith.addf %12, %15 : vector<8x4x1xf32>
    %cst_6 = arith.constant 7.812500e-03 : f32
    %17 = vector.broadcast %cst_6 : f32 to vector<8x4x1xf32>
    %18 = arith.mulf %9, %17 : vector<8x4x1xf32>
    %cst_7 = arith.constant 7.812500e-03 : f32
    %19 = vector.broadcast %cst_7 : f32 to vector<8x4x1xf32>
    %20 = arith.mulf %16, %19 : vector<8x4x1xf32>
    %21 = arith.mulf %18, %18 : vector<8x4x1xf32>
    %22 = arith.subf %20, %21 : vector<8x4x1xf32>
    %cst_8 = arith.constant 0.000000e+00 : f32
    %23 = vector.broadcast %cst_8 : f32 to vector<8x4x1xf32>
    %24 = arith.maximumf %22, %23 : vector<8x4x1xf32>
    %cst_9 = arith.constant 9.99999974E-6 : f32
    %25 = vector.broadcast %cst_9 : f32 to vector<8x4x1xf32>
    %26 = arith.addf %24, %25 : vector<8x4x1xf32>
    %27 = math.rsqrt %26 : vector<8x4x1xf32>
    %c0_10 = arith.constant 0 : index
    %c0_11 = arith.constant 0 : index
    %c0_12 = arith.constant 0 : index
    %28 = vector.load %arg2[%c0_10, %c0_11, %c0_12] : memref<2x64x64xf32, #tpu.memory_space<vmem>>, vector<2x64x64xf32>
    %29 = vector.shape_cast %2 : vector<8x4x64xf32> to vector<32x64xf32>
    %30 = vector.shape_cast %4 : vector<8x4x64xf32> to vector<32x64xf32>
    %31 = vector.extract_strided_slice %28 {offsets = [0, 0, 0], sizes = [1, 64, 64], strides = [1, 1, 1]} : vector<2x64x64xf32> to vector<1x64x64xf32>
    %32 = vector.shape_cast %31 : vector<1x64x64xf32> to vector<64x64xf32>
    %cst_13 = arith.constant dense<0.000000e+00> : vector<32x64xf32>
    %33 = tpu.matmul %29, %32, %cst_13 {dimension_numbers = #tpu.dot_dimension_numbers<[1], [0], [0], [1], [0, 0, 1, 1], [], []>} : vector<32x64xf32>, vector<64x64xf32>, vector<32x64xf32> -> vector<32x64xf32>
    %34 = vector.extract_strided_slice %28 {offsets = [1, 0, 0], sizes = [1, 64, 64], strides = [1, 1, 1]} : vector<2x64x64xf32> to vector<1x64x64xf32>
    %35 = vector.shape_cast %34 : vector<1x64x64xf32> to vector<64x64xf32>
    %cst_14 = arith.constant dense<0.000000e+00> : vector<32x64xf32>
    %36 = tpu.matmul %30, %35, %cst_14 {dimension_numbers = #tpu.dot_dimension_numbers<[1], [0], [0], [1], [0, 0, 1, 1], [], []>} : vector<32x64xf32>, vector<64x64xf32>, vector<32x64xf32> -> vector<32x64xf32>
    %37 = arith.addf %33, %36 : vector<32x64xf32>
    %38 = vector.shape_cast %37 : vector<32x64xf32> to vector<8x4x64xf32>
    %c0_15 = arith.constant 0 : index
    %c0_16 = arith.constant 0 : index
    %39 = vector.load %arg3[%c0_15, %c0_16] : memref<2x64xf32, #tpu.memory_space<vmem>>, vector<2x64xf32>
    %40 = vector.extract_strided_slice %39 {offsets = [0, 0], sizes = [1, 64], strides = [1, 1]} : vector<2x64xf32> to vector<1x64xf32>
    %41 = vector.extract_strided_slice %39 {offsets = [1, 0], sizes = [1, 64], strides = [1, 1]} : vector<2x64xf32> to vector<1x64xf32>
    %42 = vector.shape_cast %40 : vector<1x64xf32> to vector<1x1x64xf32>
    %43 = vector.broadcast %18 : vector<8x4x1xf32> to vector<8x4x64xf32>
    %44 = vector.broadcast %42 : vector<1x1x64xf32> to vector<8x4x64xf32>
    %45 = arith.mulf %43, %44 : vector<8x4x64xf32>
    %46 = arith.subf %38, %45 : vector<8x4x64xf32>
    %47 = vector.broadcast %27 : vector<8x4x1xf32> to vector<8x4x64xf32>
    %48 = arith.mulf %46, %47 : vector<8x4x64xf32>
    %49 = vector.shape_cast %41 : vector<1x64xf32> to vector<1x1x64xf32>
    %50 = vector.broadcast %49 : vector<1x1x64xf32> to vector<8x4x64xf32>
    %51 = arith.addf %48, %50 : vector<8x4x64xf32>
    %c0_17 = arith.constant 0 : index
    %c0_18 = arith.constant 0 : index
    %c0_19 = arith.constant 0 : index
    %52 = vector.load %arg4[%c0_17, %c0_18, %c0_19] : memref<8x4x64xf32, #tpu.memory_space<vmem>>, vector<8x4x64xf32>
    tpu.vector_store %arg4[%c0_17, %c0_18, %c0_19], %51 {strides = array<i32>} : memref<8x4x64xf32, #tpu.memory_space<vmem>>, vector<8x4x64xf32>,
    return
  }
  func.func @transform_0(%arg0: i32) -> (i32, i32, i32, i32) {
    %c0_i32 = arith.constant 0 : i32
    %c0_i32_0 = arith.constant 0 : i32
    %c0_i32_1 = arith.constant 0 : i32
    %c0_i32_2 = arith.constant 0 : i32
    return %arg0, %c0_i32, %c0_i32_0, %c0_i32_1 : i32, i32, i32, i32
  }
  func.func @transform_1(%arg0: i32) -> (i32, i32, i32) {
    %c0_i32 = arith.constant 0 : i32
    %c0_i32_0 = arith.constant 0 : i32
    %c0_i32_1 = arith.constant 0 : i32
    %c0_i32_2 = arith.constant 0 : i32
    return %c0_i32, %c0_i32_0, %c0_i32_1 : i32, i32, i32
  }
  func.func @transform_2(%arg0: i32) -> (i32, i32) {
    %c0_i32 = arith.constant 0 : i32
    %c0_i32_0 = arith.constant 0 : i32
    %c0_i32_1 = arith.constant 0 : i32
    return %c0_i32, %c0_i32_0 : i32, i32
  }
  func.func @transform_3(%arg0: i32) -> (i32, i32, i32) {
    %c0_i32 = arith.constant 0 : i32
    %c0_i32_0 = arith.constant 0 : i32
    %c0_i32_1 = arith.constant 0 : i32
    return %arg0, %c0_i32, %c0_i32_0 : i32, i32, i32
  }
}

</mosaic_0001>

<llo_original>
// kernel: tpu_custom_call.1
$region0: #{tpu_custom_call.1}
  #allocation0 [shape = 'u32[]', space=smem, size = 0x4, offset = 0x4, fixed_abs, tag = 'smem constant byte address 0x4 - core index']
  #allocation1 [shape = 'u32[144,128]{1,0:T(1,128)}', space=vmem, size = 0x12000, scoped, tag = 'internal scratch']
  %s0 = inlined_call_operand.hbm [shape: f32[8,2,4,64], index: 0, kind: input, shape index: {}]
  %s1 = inlined_call_operand.hbm [shape: f32[2,64,64], index: 1, kind: input, shape index: {}]
  %s2 = inlined_call_operand.vmem [shape: f32[2,64], index: 2, kind: input, shape index: {}]
  %s3 = inlined_call_operand.hbm [shape: f32[8,4,64], index: 3, kind: output, shape index: {}]
  %s4 = sld [smem:[#allocation0]]
  $region30: #{tpu_custom_call.1} parent=0
    _
  %s6 = ssub.s32 1, %s4
  %s7 = scalar_select 0, %s6, %s4
  $region1: #{tpu_custom_call.1} parent=0
    #allocation2 [shape = 'u8[32768]{0}', space=vmem, size = 0x8000, scoped, tag = 'input window, operand 0, single buffered']
    #allocation3 [shape = 's32[1]{0}', space=sflag, size = 0x4, scoped, tag = 'scoped memory for tpu_custom_call.1']
    #allocation4 [shape = 's32[1]{0}', space=sflag, size = 0x4, scoped, tag = 'scoped memory for tpu_custom_call.1']
    #allocation5 [shape = 'u8[65536]{0}', space=vmem, size = 0x10000, scoped, tag = 'input window, operand 1, single buffered']
    #allocation6 [shape = 's32[1]{0}', space=sflag, size = 0x4, scoped, tag = 'scoped memory for tpu_custom_call.1']
    #allocation7 [shape = 'u8[16384]{0}', space=vmem, size = 0x4000, scoped, tag = 'output window, operand 0, single buffered']
    %8 = vsyncpa [#allocation3], 0
    %9 = vsyncpa [#allocation6], 0
    %10 = vsyncpa [#allocation4], 0
    // Predicated region
    $region2: #{tpu_custom_call.1} parent=1 // pred_check
      _
    $region3: #{tpu_custom_call.1} parent=1 // pred_check_branch
      %12 = sbr.rel (0) target = $region5
    $region4: #{tpu_custom_call.1} parent=1 // pred_region
      %s14 = ssub.s32 1024, 1024
      %15 = vsyncadd [#allocation3], %s14
      %s16 = sshll.u32 [#allocation2], 4
      %s17 = int_to_ptr.vmem [resolvable:$true] %s16
      %22 = dma.hbm_to_vmem [thread:$0]  %s0, 1024, %s17, [#allocation3], 64, 64, 4
    $region5: #{tpu_custom_call.1} parent=1 // pred_fallthru
      _
    // Predicated region
    $region6: #{tpu_custom_call.1} parent=1 // pred_check
      _
    $region7: #{tpu_custom_call.1} parent=1 // pred_check_branch
      %24 = sbr.rel (0) target = $region9
    $region8: #{tpu_custom_call.1} parent=1 // pred_region
      %s26 = ssub.s32 2048, 2048
      %27 = vsyncadd [#allocation6], %s26
      %s28 = sshll.u32 [#allocation5], 4
      %s29 = int_to_ptr.vmem [resolvable:$true] %s28
      %34 = dma.hbm_to_vmem [thread:$0]  %s1, 2048, %s29, [#allocation6], 128, 128, 8
    $region9: #{tpu_custom_call.1} parent=1 // pred_fallthru
      _
    // Predicated region
    $region10: #{tpu_custom_call.1} parent=1 // pred_check
      _
    $region11: #{tpu_custom_call.1} parent=1 // pred_check_branch
      %36 = sbr.rel (0) target = $region13
    $region12: #{tpu_custom_call.1} parent=1 // pred_region
      _
    $region13: #{tpu_custom_call.1} parent=1 // pred_fallthru
      _
    // Predicated region
    $region14: #{tpu_custom_call.1} parent=1 // pred_check
      _
    $region15: #{tpu_custom_call.1} parent=1 // pred_check_branch
      %38 = sbr.rel (0) target = $region17
    $region16: #{tpu_custom_call.1} parent=1 // pred_region
      %39 = dma.done [#allocation3], 1024
    $region17: #{tpu_custom_call.1} parent=1 // pred_fallthru
      _
    // Predicated region
    $region18: #{tpu_custom_call.1} parent=1 // pred_check
      _
    $region19: #{tpu_custom_call.1} parent=1 // pred_check_branch
      %41 = sbr.rel (0) target = $region21
    $region20: #{tpu_custom_call.1} parent=1 // pred_region
      %42 = dma.done [#allocation6], 2048
    $region21: #{tpu_custom_call.1} parent=1 // pred_fallthru
      _
    %v43 = vld [vmem:[#allocation2] sm:$0xf]
    %v44 = vld [vmem:[#allocation2 + $0x4] sm:$0xf]
    %v45 = vld [vmem:[#allocation2 + $0x8] sm:$0xf]
    %v46 = vld [vmem:[#allocation2 + $0xc] sm:$0xf]
    %v47 = vld [vmem:[#allocation2 + $0x10] sm:$0xf]
    %v48 = vld [vmem:[#allocation2 + $0x14] sm:$0xf]
    %v49 = vld [vmem:[#allocation2 + $0x18] sm:$0xf]
    %v50 = vld [vmem:[#allocation2 + $0x1c] sm:$0xf]
    %v51 = vld [vmem:[#allocation2 + $0x20] sm:$0xf]
    %v52 = vld [vmem:[#allocation2 + $0x24] sm:$0xf]
    %v53 = vld [vmem:[#allocation2 + $0x28] sm:$0xf]
    %v54 = vld [vmem:[#allocation2 + $0x2c] sm:$0xf]
    %v55 = vld [vmem:[#allocation2 + $0x30] sm:$0xf]
    %v56 = vld [vmem:[#allocation2 + $0x34] sm:$0xf]
    %v57 = vld [vmem:[#allocation2 + $0x38] sm:$0xf]
    %v58 = vld [vmem:[#allocation2 + $0x3c] sm:$0xf]
    %vm59 = vcmask 519168
    %v60 = vsel %vm59, %v43, 0.0
    %61 = vadd.xlane.f32.xlu0 %v60
    %v62 = vpop.xlane.xlu0 %61
    %v63 = vsel %vm59, %v45, 0.0
    %64 = vadd.xlane.f32.xlu0 %v63
    %v65 = vpop.xlane.xlu0 %64
    %v66 = vsel %vm59, %v47, 0.0
    %67 = vadd.xlane.f32.xlu0 %v66
    %v68 = vpop.xlane.xlu0 %67
    %v69 = vsel %vm59, %v49, 0.0
    %70 = vadd.xlane.f32.xlu0 %v69
    %v71 = vpop.xlane.xlu0 %70
    %v72 = vsel %vm59, %v51, 0.0
    %73 = vadd.xlane.f32.xlu0 %v72
    %v74 = vpop.xlane.xlu0 %73
    %v75 = vsel %vm59, %v53, 0.0
    %76 = vadd.xlane.f32.xlu0 %v75
    %v77 = vpop.xlane.xlu0 %76
    %v78 = vsel %vm59, %v55, 0.0
    %79 = vadd.xlane.f32.xlu0 %v78
    %v80 = vpop.xlane.xlu0 %79
    %v81 = vsel %vm59, %v57, 0.0
    %82 = vadd.xlane.f32.xlu0 %v81
    %v83 = vpop.xlane.xlu0 %82
    %v84 = vsel %vm59, %v44, 0.0
    %85 = vadd.xlane.f32.xlu0 %v84
    %v86 = vpop.xlane.xlu0 %85
    %v87 = vsel %vm59, %v46, 0.0
    %88 = vadd.xlane.f32.xlu0 %v87
    %v89 = vpop.xlane.xlu0 %88
    %v90 = vsel %vm59, %v48, 0.0
    %91 = vadd.xlane.f32.xlu0 %v90
    %v92 = vpop.xlane.xlu0 %91
    %v93 = vsel %vm59, %v50, 0.0
    %94 = vadd.xlane.f32.xlu0 %v93
    %v95 = vpop.xlane.xlu0 %94
    %v96 = vsel %vm59, %v52, 0.0
    %97 = vadd.xlane.f32.xlu0 %v96
    %v98 = vpop.xlane.xlu0 %97
    %v99 = vsel %vm59, %v54, 0.0
    %100 = vadd.xlane.f32.xlu0 %v99
    %v101 = vpop.xlane.xlu0 %100
    %v102 = vsel %vm59, %v56, 0.0
    %103 = vadd.xlane.f32.xlu0 %v102
    %v104 = vpop.xlane.xlu0 %103
    %v105 = vsel %vm59, %v58, 0.0
    %106 = vadd.xlane.f32.xlu0 %v105
    %v107 = vpop.xlane.xlu0 %106
    %v108 = vadd.f32 %v62, %v86
    %v109 = vadd.f32 %v65, %v89
    %v110 = vadd.f32 %v68, %v92
    %v111 = vadd.f32 %v71, %v95
    %v112 = vadd.f32 %v74, %v98
    %v113 = vadd.f32 %v77, %v101
    %v114 = vadd.f32 %v80, %v104
    %v115 = vadd.f32 %v83, %v107
    %v116 = vmul.f32 %v43, %v43
    %v117 = vmul.f32 %v45, %v45
    %v118 = vmul.f32 %v47, %v47
    %v119 = vmul.f32 %v49, %v49
    %v120 = vmul.f32 %v51, %v51
    %v121 = vmul.f32 %v53, %v53
    %v122 = vmul.f32 %v55, %v55
    %v123 = vmul.f32 %v57, %v57
    %v124 = vsel %vm59, %v116, 0.0
    %125 = vadd.xlane.f32.xlu0 %v124
    %v126 = vpop.xlane.xlu0 %125
    %v127 = vsel %vm59, %v117, 0.0
    %128 = vadd.xlane.f32.xlu0 %v127
    %v129 = vpop.xlane.xlu0 %128
    %v130 = vsel %vm59, %v118, 0.0
    %131 = vadd.xlane.f32.xlu0 %v130
    %v132 = vpop.xlane.xlu0 %131
    %v133 = vsel %vm59, %v119, 0.0
    %134 = vadd.xlane.f32.xlu0 %v133
    %v135 = vpop.xlane.xlu0 %134
    %v136 = vsel %vm59, %v120, 0.0
    %137 = vadd.xlane.f32.xlu0 %v136
    %v138 = vpop.xlane.xlu0 %137
    %v139 = vsel %vm59, %v121, 0.0
    %140 = vadd.xlane.f32.xlu0 %v139
    %v141 = vpop.xlane.xlu0 %140
    %v142 = vsel %vm59, %v122, 0.0
    %143 = vadd.xlane.f32.xlu0 %v142
    %v144 = vpop.xlane.xlu0 %143
    %v145 = vsel %vm59, %v123, 0.0
    %146 = vadd.xlane.f32.xlu0 %v145
    %v147 = vpop.xlane.xlu0 %146
    %v148 = vmul.f32 %v44, %v44
    %v149 = vmul.f32 %v46, %v46
    %v150 = vmul.f32 %v48, %v48
    %v151 = vmul.f32 %v50, %v50
    %v152 = vmul.f32 %v52, %v52
    %v153 = vmul.f32 %v54, %v54
    %v154 = vmul.f32 %v56, %v56
    %v155 = vmul.f32 %v58, %v58
    %v156 = vsel %vm59, %v148, 0.0
    %157 = vadd.xlane.f32.xlu0 %v156
    %v158 = vpop.xlane.xlu0 %157
    %v159 = vsel %vm59, %v149, 0.0
    %160 = vadd.xlane.f32.xlu0 %v159
    %v161 = vpop.xlane.xlu0 %160
    %v162 = vsel %vm59, %v150, 0.0
    %163 = vadd.xlane.f32.xlu0 %v162
    %v164 = vpop.xlane.xlu0 %163
    %v165 = vsel %vm59, %v151, 0.0
    %166 = vadd.xlane.f32.xlu0 %v165
    %v167 = vpop.xlane.xlu0 %166
    %v168 = vsel %vm59, %v152, 0.0
    %169 = vadd.xlane.f32.xlu0 %v168
    %v170 = vpop.xlane.xlu0 %169
    %v171 = vsel %vm59, %v153, 0.0
    %172 = vadd.xlane.f32.xlu0 %v171
    %v173 = vpop.xlane.xlu0 %172
    %v174 = vsel %vm59, %v154, 0.0
    %175 = vadd.xlane.f32.xlu0 %v174
    %v176 = vpop.xlane.xlu0 %175
    %v177 = vsel %vm59, %v155, 0.0
    %178 = vadd.xlane.f32.xlu0 %v177
    %v179 = vpop.xlane.xlu0 %178
    %v180 = vadd.f32 %v126, %v158
    %v181 = vadd.f32 %v129, %v161
    %v182 = vadd.f32 %v132, %v164
    %v183 = vadd.f32 %v135, %v167
    %v184 = vadd.f32 %v138, %v170
    %v185 = vadd.f32 %v141, %v173
    %v186 = vadd.f32 %v144, %v176
    %v187 = vadd.f32 %v147, %v179
    %v188 = vmul.f32 %v108, 0.0078125
    %v189 = vmul.f32 %v109, 0.0078125
    %v190 = vmul.f32 %v110, 0.0078125
    %v191 = vmul.f32 %v111, 0.0078125
    %v192 = vmul.f32 %v112, 0.0078125
    %v193 = vmul.f32 %v113, 0.0078125
    %v194 = vmul.f32 %v114, 0.0078125
    %v195 = vmul.f32 %v115, 0.0078125
    %v196 = vmul.f32 %v180, 0.0078125
    %v197 = vmul.f32 %v181, 0.0078125
    %v198 = vmul.f32 %v182, 0.0078125
    %v199 = vmul.f32 %v183, 0.0078125
    %v200 = vmul.f32 %v184, 0.0078125
    %v201 = vmul.f32 %v185, 0.0078125
    %v202 = vmul.f32 %v186, 0.0078125
    %v203 = vmul.f32 %v187, 0.0078125
    %v204 = vmul.f32 %v188, %v188
    %v205 = vmul.f32 %v189, %v189
    %v206 = vmul.f32 %v190, %v190
    %v207 = vmul.f32 %v191, %v191
    %v208 = vmul.f32 %v192, %v192
    %v209 = vmul.f32 %v193, %v193
    %v210 = vmul.f32 %v194, %v194
    %v211 = vmul.f32 %v195, %v195
    %v212 = vsub.f32 %v196, %v204
    %v213 = vsub.f32 %v197, %v205
    %v214 = vsub.f32 %v198, %v206
    %v215 = vsub.f32 %v199, %v207
    %v216 = vsub.f32 %v200, %v208
    %v217 = vsub.f32 %v201, %v209
    %v218 = vsub.f32 %v202, %v210
    %v219 = vsub.f32 %v203, %v211
    %v220 = vmax.f32 %v212, 0.0
    %v221 = vmax.f32 %v213, 0.0
    %v222 = vmax.f32 %v214, 0.0
    %v223 = vmax.f32 %v215, 0.0
    %v224 = vmax.f32 %v216, 0.0
    %v225 = vmax.f32 %v217, 0.0
    %v226 = vmax.f32 %v218, 0.0
    %v227 = vmax.f32 %v219, 0.0
    %v228 = vadd.f32 %v220, 1e-05
    %v229 = vadd.f32 %v221, 1e-05
    %v230 = vadd.f32 %v222, 1e-05
    %v231 = vadd.f32 %v223, 1e-05
    %v232 = vadd.f32 %v224, 1e-05
    %v233 = vadd.f32 %v225, 1e-05
    %v234 = vadd.f32 %v226, 1e-05
    %v235 = vadd.f32 %v227, 1e-05
    %v236 = vrsqrt.pop %v228
    %v237 = vrsqrt.pop %v229
    %v238 = vrsqrt.pop %v230
    %v239 = vrsqrt.pop %v231
    %v240 = vrsqrt.pop %v232
    %v241 = vrsqrt.pop %v233
    %v242 = vrsqrt.pop %v234
    %v243 = vrsqrt.pop %v235
    %v244 = vld [vmem:[#allocation5] sm:$0xff]
    %v245 = vld [vmem:[#allocation5 + $0x8] sm:$0xff]
    %v246 = vld [vmem:[#allocation5 + $0x10] sm:$0xff]
    %v247 = vld [vmem:[#allocation5 + $0x18] sm:$0xff]
    %v248 = vld [vmem:[#allocation5 + $0x20] sm:$0xff]
    %v249 = vld [vmem:[#allocation5 + $0x28] sm:$0xff]
    %v250 = vld [vmem:[#allocation5 + $0x30] sm:$0xff]
    %v251 = vld [vmem:[#allocation5 + $0x38] sm:$0xff]
    %v252 = vld [vmem:[#allocation5 + $0x40] sm:$0xff]
    %v253 = vld [vmem:[#allocation5 + $0x48] sm:$0xff]
    %v254 = vld [vmem:[#allocation5 + $0x50] sm:$0xff]
    %v255 = vld [vmem:[#allocation5 + $0x58] sm:$0xff]
    %v256 = vld [vmem:[#allocation5 + $0x60] sm:$0xff]
    %v257 = vld [vmem:[#allocation5 + $0x68] sm:$0xff]
    %v258 = vld [vmem:[#allocation5 + $0x70] sm:$0xff]
    %v259 = vld [vmem:[#allocation5 + $0x78] sm:$0xff]
    %v268 = vcombine.low %v44, %v46
    %v269 = vcombine.low %v48, %v50
    %v270 = vcombine.low %v52, %v54
    %v271 = vcombine.low %v56, %v58
    %vm272 = vcmask 523264
    %v273 = vsel %vm272, %v268, 0
    %v275 = vsel %vm272, %v269, 0
    %v277 = vsel %vm272, %v270, 0
    %v279 = vsel %vm272, %v271, 0
    %281 = vmatprep.subr.mxu0 0.0
    %282 = vmatpush1.msra.mxu0 %v252
    %283 = vmatprep.subr.mxu0 0.0
    %284 = vmatpush1.msra.mxu0 %v253
    %285 = vmatprep.subr.mxu0 0.0
    %286 = vmatpush1.msra.mxu0 %v254
    %287 = vmatprep.subr.mxu0 0.0
    %288 = vmatpush1.msra.mxu0 %v255
    %289 = vmatprep.subr.mxu0 0.0
    %290 = vmatpush1.msra.mxu0 %v256
    %291 = vmatprep.subr.mxu0 0.0
    %292 = vmatpush1.msra.mxu0 %v257
    %293 = vmatprep.subr.mxu0 0.0
    %294 = vmatpush1.msra.mxu0 %v258
    %295 = vmatprep.subr.mxu0 0.0
    %296 = vmatpush1.msra.mxu0 %v259
    %297 = vmatprep.subr.mxu0 0.0
    %298 = vmatpush1.msra.mxu0 0.0
    %299 = vmatprep.subr.mxu0 0.0
    %300 = vmatpush1.msra.mxu0 0.0
    %301 = vmatprep.subr.mxu0 0.0
    %302 = vmatpush1.msra.mxu0 0.0
    %303 = vmatprep.subr.mxu0 0.0
    %304 = vmatpush1.msra.mxu0 0.0
    %305 = vmatprep.subr.mxu0 0.0
    %306 = vmatpush1.msra.mxu0 0.0
    %307 = vmatprep.subr.mxu0 0.0
    %308 = vmatpush1.msra.mxu0 0.0
    %309 = vmatprep.subr.mxu0 0.0
    %310 = vmatpush1.msra.mxu0 0.0
    %311 = vmatprep.subr.mxu0 0.0
    %312 = vmatpush1.msra.mxu0 0.0
    %313 = vmatprep.subr.mxu0 0.0
    %314 = vmatpush1.msra.mxu0 0.0
    %315 = vmatprep.subr.mxu0 0.0
    %316 = vmatpush1.msra.mxu0 0.0
    %317 = vmatprep.subr.mxu0 0.0
    %318 = vmatpush1.msra.mxu0 0.0
    %319 = vmatprep.subr.mxu0 0.0
    %320 = vmatpush1.msra.mxu0 0.0
    %321 = vmatprep.subr.mxu0 0.0
    %322 = vmatpush1.msra.mxu0 0.0
    %323 = vmatprep.subr.mxu0 0.0
    %324 = vmatpush1.msra.mxu0 0.0
    %325 = vmatprep.subr.mxu0 0.0
    %326 = vmatpush1.msra.mxu0 0.0
    %327 = vmatprep.subr.mxu0 0.0
    %328 = vmatpush1.msra.mxu0 0.0
    %329 = vmatprep.subr.mxu0 0.0
    %330 = vmatpush1.msra.mxu0 0.0
    %331 = vmatprep.subr.mxu0 0.0
    %332 = vmatpush1.msra.mxu0 0.0
    %333 = vmatprep.subr.mxu0 0.0
    %334 = vmatpush1.msra.mxu0 0.0
    %335 = vmatprep.subr.mxu0 0.0
    %336 = vmatpush1.msra.mxu0 0.0
    %337 = vmatprep.subr.mxu0 0.0
    %338 = vmatpush1.msra.mxu0 0.0
    %339 = vmatprep.subr.mxu0 0.0
    %340 = vmatpush1.msra.mxu0 0.0
    %341 = vmatprep.subr.mxu0 0.0
    %342 = vmatpush1.msra.mxu0 0.0
    %343 = vmatprep.subr.mxu0 0.0
    %344 = vmatpush1.msra.mxu0 0.0
    %345 = vmatprep.mubr.f32.mxu0 0.0
    %346 = vmatmul.mubr.f32.gmra.mrb[0].mxu0 %v273
    %v347 = vpop.f32.mrb[0].mxu0
    %v348 = vadd.f32 0.0, %v347
    %v349 = vpop.f32.mrb[0].mxu0
    %350 = vmatprep.mubr.f32.mxu0 0.0
    %351 = vmatmul.mubr.f32.gmra.mrb[0].mxu0 %v275
    %v352 = vpop.f32.mrb[0].mxu0
    %v353 = vadd.f32 0.0, %v352
    %v354 = vpop.f32.mrb[0].mxu0
    %355 = vmatprep.mubr.f32.mxu0 0.0
    %356 = vmatmul.mubr.f32.gmra.mrb[0].mxu0 %v277
    %v357 = vpop.f32.mrb[0].mxu0
    %v358 = vadd.f32 0.0, %v357
    %v359 = vpop.f32.mrb[0].mxu0
    %360 = vmatprep.mubr.f32.mxu0 0.0
    %361 = vmatmul.mubr.f32.gmra.mrb[0].mxu0 %v279
    %v362 = vpop.f32.mrb[0].mxu0
    %v363 = vadd.f32 0.0, %v362
    %v364 = vpop.f32.mrb[0].mxu0
    %365 = vdwg.mxu0
    %v374 = vcombine.low %v43, %v45
    %v375 = vcombine.low %v47, %v49
    %v376 = vcombine.low %v51, %v53
    %v377 = vcombine.low %v55, %v57
    %v378 = vsel %vm272, %v374, 0
    %v380 = vsel %vm272, %v375, 0
    %v382 = vsel %vm272, %v376, 0
    %v384 = vsel %vm272, %v377, 0
    %386 = vmatprep.subr.mxu0 0.0
    %387 = vmatpush1.msra.mxu0 %v244
    %388 = vmatprep.subr.mxu0 0.0
    %389 = vmatpush1.msra.mxu0 %v245
    %390 = vmatprep.subr.mxu0 0.0
    %391 = vmatpush1.msra.mxu0 %v246
    %392 = vmatprep.subr.mxu0 0.0
    %393 = vmatpush1.msra.mxu0 %v247
    %394 = vmatprep.subr.mxu0 0.0
    %395 = vmatpush1.msra.mxu0 %v248
    %396 = vmatprep.subr.mxu0 0.0
    %397 = vmatpush1.msra.mxu0 %v249
    %398 = vmatprep.subr.mxu0 0.0
    %399 = vmatpush1.msra.mxu0 %v250
    %400 = vmatprep.subr.mxu0 0.0
    %401 = vmatpush1.msra.mxu0 %v251
    %402 = vmatprep.subr.mxu0 0.0
    %403 = vmatpush1.msra.mxu0 0.0
    %404 = vmatprep.subr.mxu0 0.0
    %405 = vmatpush1.msra.mxu0 0.0
    %406 = vmatprep.subr.mxu0 0.0
    %407 = vmatpush1.msra.mxu0 0.0
    %408 = vmatprep.subr.mxu0 0.0
    %409 = vmatpush1.msra.mxu0 0.0
    %410 = vmatprep.subr.mxu0 0.0
    %411 = vmatpush1.msra.mxu0 0.0
    %412 = vmatprep.subr.mxu0 0.0
    %413 = vmatpush1.msra.mxu0 0.0
    %414 = vmatprep.subr.mxu0 0.0
    %415 = vmatpush1.msra.mxu0 0.0
    %416 = vmatprep.subr.mxu0 0.0
    %417 = vmatpush1.msra.mxu0 0.0
    %418 = vmatprep.subr.mxu0 0.0
    %419 = vmatpush1.msra.mxu0 0.0
    %420 = vmatprep.subr.mxu0 0.0
    %421 = vmatpush1.msra.mxu0 0.0
    %422 = vmatprep.subr.mxu0 0.0
    %423 = vmatpush1.msra.mxu0 0.0
    %424 = vmatprep.subr.mxu0 0.0
    %425 = vmatpush1.msra.mxu0 0.0
    %426 = vmatprep.subr.mxu0 0.0
    %427 = vmatpush1.msra.mxu0 0.0
    %428 = vmatprep.subr.mxu0 0.0
    %429 = vmatpush1.msra.mxu0 0.0
    %430 = vmatprep.subr.mxu0 0.0
    %431 = vmatpush1.msra.mxu0 0.0
    %432 = vmatprep.subr.mxu0 0.0
    %433 = vmatpush1.msra.mxu0 0.0
    %434 = vmatprep.subr.mxu0 0.0
    %435 = vmatpush1.msra.mxu0 0.0
    %436 = vmatprep.subr.mxu0 0.0
    %437 = vmatpush1.msra.mxu0 0.0
    %438 = vmatprep.subr.mxu0 0.0
    %439 = vmatpush1.msra.mxu0 0.0
    %440 = vmatprep.subr.mxu0 0.0
    %441 = vmatpush1.msra.mxu0 0.0
    %442 = vmatprep.subr.mxu0 0.0
    %443 = vmatpush1.msra.mxu0 0.0
    %444 = vmatprep.subr.mxu0 0.0
    %445 = vmatpush1.msra.mxu0 0.0
    %446 = vmatprep.subr.mxu0 0.0
    %447 = vmatpush1.msra.mxu0 0.0
    %448 = vmatprep.subr.mxu0 0.0
    %449 = vmatpush1.msra.mxu0 0.0
    %450 = vmatprep.mubr.f32.mxu0 0.0
    %451 = vmatmul.mubr.f32.gmra.mrb[0].mxu0 %v378
    %v452 = vpop.f32.mrb[0].mxu0
    %v453 = vadd.f32 %v348, %v452
    %v454 = vpop.f32.mrb[0].mxu0
    %455 = vmatprep.mubr.f32.mxu0 0.0
    %456 = vmatmul.mubr.f32.gmra.mrb[0].mxu0 %v380
    %v457 = vpop.f32.mrb[0].mxu0
    %v458 = vadd.f32 %v353, %v457
    %v459 = vpop.f32.mrb[0].mxu0
    %460 = vmatprep.mubr.f32.mxu0 0.0
    %461 = vmatmul.mubr.f32.gmra.mrb[0].mxu0 %v382
    %v462 = vpop.f32.mrb[0].mxu0
    %v463 = vadd.f32 %v358, %v462
    %v464 = vpop.f32.mrb[0].mxu0
    %465 = vmatprep.mubr.f32.mxu0 0.0
    %466 = vmatmul.mubr.f32.gmra.mrb[0].mxu0 %v384
    %v467 = vpop.f32.mrb[0].mxu0
    %v468 = vadd.f32 %v363, %v467
    %v469 = vpop.f32.mrb[0].mxu0
    %470 = vdwg.mxu0
    %v475 = vcombine.high %v453, %v453
    %v476 = vcombine.high %v458, %v458
    %v477 = vcombine.high %v463, %v463
    %v478 = vcombine.high %v468, %v468
    %v483 = vld [vmem:[%s2] sm:$0x3]
    %v484 = vlaneseq
    %v485 = vshrl.u32 %v484, 7
    %v486 = vsub.s32 0, %v485
    %v487 = vrot.slane %v483, %v486
    %v488 = vmul.f32 %v188, %v487
    %v489 = vmul.f32 %v189, %v487
    %v490 = vmul.f32 %v190, %v487
    %v491 = vmul.f32 %v191, %v487
    %v492 = vmul.f32 %v192, %v487
    %v493 = vmul.f32 %v193, %v487
    %v494 = vmul.f32 %v194, %v487
    %v495 = vmul.f32 %v195, %v487
    %v496 = vsub.f32 %v453, %v488
    %v497 = vsub.f32 %v475, %v489
    %v498 = vsub.f32 %v458, %v490
    %v499 = vsub.f32 %v476, %v491
    %v500 = vsub.f32 %v463, %v492
    %v501 = vsub.f32 %v477, %v493
    %v502 = vsub.f32 %v468, %v494
    %v503 = vsub.f32 %v478, %v495
    %v504 = vmul.f32 %v496, %v236
    %v505 = vmul.f32 %v497, %v237
    %v506 = vmul.f32 %v498, %v238
    %v507 = vmul.f32 %v499, %v239
    %v508 = vmul.f32 %v500, %v240
    %v509 = vmul.f32 %v501, %v241
    %v510 = vmul.f32 %v502, %v242
    %v511 = vmul.f32 %v503, %v243
    %v512 = vlaneseq
    %v513 = vshrl.u32 %v512, 7
    %v514 = vsub.s32 1, %v513
    %v515 = vrot.slane %v483, %v514
    %v516 = vadd.f32 %v504, %v515
    %v517 = vadd.f32 %v505, %v515
    %v518 = vadd.f32 %v506, %v515
    %v519 = vadd.f32 %v507, %v515
    %v520 = vadd.f32 %v508, %v515
    %v521 = vadd.f32 %v509, %v515
    %v522 = vadd.f32 %v510, %v515
    %v523 = vadd.f32 %v511, %v515
    %524 = vst.msk [vmem:[#allocation7] sm:$0xf] %vm59, %v516
    %525 = vst.msk [vmem:[#allocation7 + $0x4] sm:$0xf] %vm59, %v517
    %526 = vst.msk [vmem:[#allocation7 + $0x8] sm:$0xf] %vm59, %v518
    %527 = vst.msk [vmem:[#allocation7 + $0xc] sm:$0xf] %vm59, %v519
    %528 = vst.msk [vmem:[#allocation7 + $0x10] sm:$0xf] %vm59, %v520
    %529 = vst.msk [vmem:[#allocation7 + $0x14] sm:$0xf] %vm59, %v521
    %530 = vst.msk [vmem:[#allocation7 + $0x18] sm:$0xf] %vm59, %v522
    %531 = vst.msk [vmem:[#allocation7 + $0x1c] sm:$0xf] %vm59, %v523
    // Predicated region
    $region22: #{tpu_custom_call.1} parent=1 // pred_check
      _
    $region23: #{tpu_custom_call.1} parent=1 // pred_check_branch
      %533 = sbr.rel (0) target = $region25
    $region24: #{tpu_custom_call.1} parent=1 // pred_region
      %s535 = ssub.s32 512, 512
      %536 = vsyncadd [#allocation4], %s535
      %s537 = sshll.u32 [#allocation7], 4
      %s538 = int_to_ptr.vmem [resolvable:$true] %s537
      %543 = dma.vmem_to_hbm [thread:$0]  %s538, 512, %s3, [#allocation4], 64, 64, 4
    $region25: #{tpu_custom_call.1} parent=1 // pred_fallthru
      _
    // Predicated region
    $region26: #{tpu_custom_call.1} parent=1 // pred_check
      _
    $region27: #{tpu_custom_call.1} parent=1 // pred_check_branch
      %545 = sbr.rel (0) target = $region29
    $region28: #{tpu_custom_call.1} parent=1 // pred_region
      %546 = dma.done [#allocation4], 512
    $region29: #{tpu_custom_call.1} parent=1 // pred_fallthru
      _
    %547 = vsyncpa [#allocation3], 1
    %548 = vsyncpa [#allocation6], 1
    %549 = vsyncpa [#allocation4], 1

</llo_original>
